<compile_context>
chip_gen: v6e
topology: v6e:2x2x1
jax: 0.10.0
libtpu: 0.0.40
codegen_flags: <defaults>
</compile_context>

<pallas_src>
import functools

import jax
import jax.numpy as jnp
from jax.experimental import pallas as pl
from jax.experimental.pallas import tpu as pltpu


def _round_up(x, m):
    return (x + m - 1) // m * m


def circulant_matmul_kernel(x_ref, c_ref, o_ref, acc_ref):
    """Computes one (tile_b, tile_n) output tile; grid axis 2 reduces over K."""
    k = pl.program_id(2)

    @pl.when(k == 0)
    def _():
        acc_ref[...] = jnp.zeros_like(acc_ref)

    # bf16 x bf16 -> f32 accumulate on the MXU.
    acc_ref[...] += jnp.dot(
        x_ref[...], c_ref[...], preferred_element_type=jnp.float32
    )

    @pl.when(k == pl.num_programs(2) - 1)
    def _():
        o_ref[...] = acc_ref[...].astype(o_ref.dtype)


def _build_circulant(c):
    """C[m, k] = c[(k - m) mod n], built without any gather.

    Tile the doubled vector c2 (length 2n) n times, drop the last n entries and
    reshape to (n, 2n-1): row m is then c2 rotated left by m, so its first n
    columns are exactly c[(k - m) mod n].  Pure broadcast/slice/reshape -> cheap
    on TPU compared to an O(n^2) gather.
    """
    n = c.shape[0]
    c2 = jnp.concatenate([c, c])                      # [2n]
    flat = jnp.tile(c2, n)[: n * (2 * n - 1)]         # [n*(2n-1)]
    return flat.reshape(n, 2 * n - 1)[:, :n]          # [n, n]


@functools.partial(jax.jit, static_argnames=("operand_dtype",))
def fft_circulant_forward(x, c, *, operand_dtype=jnp.bfloat16):
    """Equivalent of FFTCirculantLayer.forward(x) with parameter c (shape [n])."""
    n = c.shape[0]
    B, D = x.shape

    # torch.fft.fft(x, n=n, dim=-1) semantics: zero-pad or truncate last dim to n.
    if D < n:
        x = jnp.pad(x, ((0, 0), (0, n - D)))
    elif D > n:
        x = x[:, :n]

    # Build the circulant directly in the operand dtype (halves construction traffic).
    cmat = _build_circulant(c.astype(operand_dtype))  # [n, n] glue (plain JAX, no gather)

    # ---- tiling --------------------------------------------------------------
    sub = 16 if operand_dtype == jnp.bfloat16 else 8  # sublane multiple for operands
    tile_b = min(512, _round_up(B, sub))              # big M tiles: fewer HBM sweeps over C
    tile_n = 256 if n >= 256 else 128                 # MXU-native (2x256 v6e/v7x, 4x128 v5e)
    tile_k = tile_n

    B_pad = _round_up(B, tile_b)
    n_pad = _round_up(n, tile_n)                      # lane-dense output (>=128, unmasked vst)

    x_p = jnp.pad(x.astype(operand_dtype), ((0, B_pad - B), (0, n_pad - n)))
    c_p = jnp.pad(cmat, ((0, n_pad - n), (0, n_pad - n)))

    grid = (B_pad // tile_b, n_pad // tile_n, n_pad // tile_k)

    itemsize = jnp.dtype(operand_dtype).itemsize
    cost = pl.CostEstimate(
        flops=2 * B_pad * n_pad * n_pad,
        transcendentals=0,
        bytes_accessed=(
            B_pad * n_pad * itemsize                       # x
            + grid[0] * n_pad * n_pad * itemsize           # C, streamed once per batch tile
            + B_pad * n_pad * 4                            # f32 output
        ),
    )

    out = pl.pallas_call(
        circulant_matmul_kernel,
        out_shape=jax.ShapeDtypeStruct((B_pad, n_pad), jnp.float32),
        grid_spec=pltpu.PrefetchScalarGridSpec(
            num_scalar_prefetch=0,
            grid=grid,
            in_specs=[
                pl.BlockSpec((tile_b, tile_k), lambda i, j, k: (i, k)),
                pl.BlockSpec((tile_k, tile_n), lambda i, j, k: (k, j)),
            ],
            out_specs=pl.BlockSpec((tile_b, tile_n), lambda i, j, k: (i, j)),
            scratch_shapes=[pltpu.VMEM((tile_b, tile_n), jnp.float32)],
        ),
        compiler_params=pltpu.CompilerParams(
            dimension_semantics=("parallel", "parallel", "arbitrary"),
        ),
        cost_estimate=cost,
    )(x_p, c_p)

    return out[:B, :n]


def fft_circulant_reference(x, c):
    """Pure-JAX reference mirroring the PyTorch forward literally."""
    n = c.shape[0]
    c_fft = jnp.fft.fft(c)
    x_fft = jnp.fft.fft(x, n=n, axis=-1)
    result = jnp.fft.ifft(c_fft * x_fft, axis=-1)
    return jnp.real(result).astype(jnp.float32)


def _check(y, y_ref, tag):
    # bf16 operands with f32 accumulation: abs error ~ sqrt(n) * 2^-9, so compare
    # relative to the output magnitude rather than elementwise atol=1e-3.
    err = jnp.max(jnp.abs(y - y_ref)) / jnp.maximum(1.0, jnp.max(jnp.abs(y_ref)))
    assert float(err) < 1e-2, f"{tag}: mismatch vs FFT reference (rel err {float(err):.3e})"


if __name__ == "__main__":
    key = jax.random.PRNGKey(0)
    k_c, k_x, k_x2 = jax.random.split(key, 3)

    n = 128   # circulant size (feature dim)
    B = 8     # batch

    c = jax.random.normal(k_c, (n,), dtype=jnp.float32)    # nn.Parameter(torch.randn(n))
    x = jax.random.normal(k_x, (B, n), dtype=jnp.float32)  # input [B, D] with D == n

    y = jax.block_until_ready(fft_circulant_forward(x, c))
    assert y.shape == (B, n) and y.dtype == jnp.float32
    _check(y, fft_circulant_reference(x, c), "D==n")

    # Second case exercises the D != n zero-pad path and a ragged batch.
    x2 = jax.random.normal(k_x2, (5, 100), dtype=jnp.float32)
    y2 = jax.block_until_ready(fft_circulant_forward(x2, c))
    assert y2.shape == (5, n) and y2.dtype == jnp.float32
    _check(y2, fft_circulant_reference(x2, c), "D<n")

    print("KERNEL_OK")
</pallas_src>

<mosaic_0001>
module attributes {stable_mosaic.version = 11 : i64} {
  func.func @circulant_matmul_kernel(%arg0: i32, %arg1: i32, %arg2: i32, %arg3: memref<16x128xbf16, #tpu.memory_space<vmem>>, %arg4: memref<128x128xbf16, #tpu.memory_space<vmem>>, %arg5: memref<16x128xf32, #tpu.memory_space<vmem>>, %arg6: memref<16x128xf32, #tpu.memory_space<vmem>>) attributes {dimension_semantics = [#tpu.dimension_semantics<parallel>, #tpu.dimension_semantics<parallel>, #tpu.dimension_semantics<arbitrary>], iteration_bounds = array<i64: 1, 1, 1>, scalar_prefetch = 0 : i64, scratch_operands = 1 : i64, tpu.core_type = #tpu.core_type<tc>, window_params = [{transform_indices = @transform_0, window_bounds = array<i64: 16, 128>}, {transform_indices = @transform_1, window_bounds = array<i64: 128, 128>}, {transform_indices = @transform_2, window_bounds = array<i64: 16, 128>}]} {
    %c0_i32 = arith.constant 0 : i32
    %0 = arith.cmpi eq, %arg2, %c0_i32 : i32
    %1 = arith.extui %0 : i1 to i32
    %c0_i32_0 = arith.constant 0 : i32
    %2 = arith.cmpi ne, %1, %c0_i32_0 : i32
    scf.if %2 {
      %cst_10 = arith.constant 0.000000e+00 : f32
      %12 = vector.broadcast %cst_10 : f32 to vector<16x128xf32>
      %c0_11 = arith.constant 0 : index
      %c0_12 = arith.constant 0 : index
      %13 = vector.load %arg6[%c0_11, %c0_12] : memref<16x128xf32, #tpu.memory_space<vmem>>, vector<16x128xf32>
      tpu.vector_store %arg6[%c0_11, %c0_12], %12 {strides = array<i32>} : memref<16x128xf32, #tpu.memory_space<vmem>>, vector<16x128xf32>,
    } else {
    }
    %c0 = arith.constant 0 : index
    %c0_1 = arith.constant 0 : index
    %3 = vector.load %arg6[%c0, %c0_1] : memref<16x128xf32, #tpu.memory_space<vmem>>, vector<16x128xf32>
    %c0_2 = arith.constant 0 : index
    %c0_3 = arith.constant 0 : index
    %4 = vector.load %arg3[%c0_2, %c0_3] : memref<16x128xbf16, #tpu.memory_space<vmem>>, vector<16x128xbf16>
    %c0_4 = arith.constant 0 : index
    %c0_5 = arith.constant 0 : index
    %5 = vector.load %arg4[%c0_4, %c0_5] : memref<128x128xbf16, #tpu.memory_space<vmem>>, vector<128x128xbf16>
    %cst = arith.constant dense<0.000000e+00> : vector<16x128xf32>
    %6 = tpu.matmul %4, %5, %cst {dimension_numbers = #tpu.dot_dimension_numbers<[1], [0], [0], [1], [0, 0, 1, 1], [], []>} : vector<16x128xbf16>, vector<128x128xbf16>, vector<16x128xf32> -> vector<16x128xf32>
    %7 = arith.addf %3, %6 : vector<16x128xf32>
    %c0_6 = arith.constant 0 : index
    %c0_7 = arith.constant 0 : index
    %8 = vector.load %arg6[%c0_6, %c0_7] : memref<16x128xf32, #tpu.memory_space<vmem>>, vector<16x128xf32>
    tpu.vector_store %arg6[%c0_6, %c0_7], %7 {strides = array<i32>} : memref<16x128xf32, #tpu.memory_space<vmem>>, vector<16x128xf32>,
    %c0_i32_8 = arith.constant 0 : i32
    %9 = arith.cmpi eq, %arg2, %c0_i32_8 : i32
    %10 = arith.extui %9 : i1 to i32
    %c0_i32_9 = arith.constant 0 : i32
    %11 = arith.cmpi ne, %10, %c0_i32_9 : i32
    scf.if %11 {
      %c0_10 = arith.constant 0 : index
      %c0_11 = arith.constant 0 : index
      %12 = vector.load %arg6[%c0_10, %c0_11] : memref<16x128xf32, #tpu.memory_space<vmem>>, vector<16x128xf32>
      %c0_12 = arith.constant 0 : index
      %c0_13 = arith.constant 0 : index
      %13 = vector.load %arg5[%c0_12, %c0_13] : memref<16x128xf32, #tpu.memory_space<vmem>>, vector<16x128xf32>
      tpu.vector_store %arg5[%c0_12, %c0_13], %12 {strides = array<i32>} : memref<16x128xf32, #tpu.memory_space<vmem>>, vector<16x128xf32>,
    } else {
    }
    return
  }
  func.func @transform_0(%arg0: i32, %arg1: i32, %arg2: i32) -> (i32, i32) {
    %c0_i32 = arith.constant 0 : i32
    return %arg0, %arg2 : i32, i32
  }
  func.func @transform_1(%arg0: i32, %arg1: i32, %arg2: i32) -> (i32, i32) {
    %c0_i32 = arith.constant 0 : i32
    return %arg2, %arg1 : i32, i32
  }
  func.func @transform_2(%arg0: i32, %arg1: i32, %arg2: i32) -> (i32, i32) {
    %c0_i32 = arith.constant 0 : i32
    return %arg0, %arg1 : i32, i32
  }
}

</mosaic_0001>

<llo_original>
// kernel: fft_circulant_forward.1
$region0: #{fft_circulant_forward.1}
  #allocation0 [shape = 'u32[]', space=smem, size = 0x4, offset = 0x4, fixed_abs, tag = 'smem constant byte address 0x4 - core index']
  #allocation1 [shape = 'u32[144,128]{1,0:T(1,128)}', space=vmem, size = 0x12000, scoped, tag = 'internal scratch']
  #allocation2 [shape = 'f32[16,128]{1,0:T(8,128)}', space=vmem, size = 0x2000, scoped, tag = 'scratch operand']
  %s0 = inlined_call_operand.vmem [shape: bf16[16,128], index: 0, kind: input, shape index: {}]
  %s1 = inlined_call_operand.vmem [shape: bf16[128,128], index: 1, kind: input, shape index: {}]
  %s2 = inlined_call_operand.vmem [shape: f32[16,128], index: 2, kind: output, shape index: {}]
  %s3 = sld [smem:[#allocation0]]
  $region26: #{fft_circulant_forward.1} parent=0
    _
  %s5 = ssub.s32 1, %s3
  %s6 = scalar_select 0, %s5, %s3
  // Predicated region
  $region2: #{fft_circulant_forward.1} parent=0 // pred_check
    _
  $region3: #{fft_circulant_forward.1} parent=0 // pred_check_branch
    %8 = sbr.rel (0) target = $region5
  $region4: #{fft_circulant_forward.1} parent=0 // pred_region
    _
  $region5: #{fft_circulant_forward.1} parent=0 // pred_fallthru
    _
  // Predicated region
  $region6: #{fft_circulant_forward.1} parent=0 // pred_check
    _
  $region7: #{fft_circulant_forward.1} parent=0 // pred_check_branch
    %10 = sbr.rel (0) target = $region9
  $region8: #{fft_circulant_forward.1} parent=0 // pred_region
    _
  $region9: #{fft_circulant_forward.1} parent=0 // pred_fallthru
    _
  %p12 = scmp.eq.s32.totalorder 0, 0
  // Predicated region
  $region10: #{fft_circulant_forward.1} parent=0 // pred_check
    %p13 = pneg %p12
  $region11: #{fft_circulant_forward.1} parent=0 // pred_check_branch
    %15 = sbr.rel (%p13) target = $region13
  $region12: #{fft_circulant_forward.1} parent=0 // pred_region
    %16 = vst [vmem:[#allocation2] sm:$0xff] 0.0
    %17 = vst [vmem:[#allocation2 + $0x8] sm:$0xff] 0.0
  $region13: #{fft_circulant_forward.1} parent=0 // pred_fallthru
    _
  %v18 = vld [vmem:[#allocation2] sm:$0xff]
  %v19 = vld [vmem:[#allocation2 + $0x8] sm:$0xff]
  %v20 = vld [vmem:[%s0] sm:$0xf]
  %v21 = vld [vmem:[%s0 + $0x4] sm:$0xf]
  %v22 = vld [vmem:[%s1] sm:$0xf]
  %v23 = vld [vmem:[%s1 + $0x4] sm:$0xf]
  %v24 = vld [vmem:[%s1 + $0x8] sm:$0xf]
  %v25 = vld [vmem:[%s1 + $0xc] sm:$0xf]
  %v26 = vld [vmem:[%s1 + $0x10] sm:$0xf]
  %v27 = vld [vmem:[%s1 + $0x14] sm:$0xf]
  %v28 = vld [vmem:[%s1 + $0x18] sm:$0xf]
  %v29 = vld [vmem:[%s1 + $0x1c] sm:$0xf]
  %v30 = vld [vmem:[%s1 + $0x20] sm:$0xf]
  %v31 = vld [vmem:[%s1 + $0x24] sm:$0xf]
  %v32 = vld [vmem:[%s1 + $0x28] sm:$0xf]
  %v33 = vld [vmem:[%s1 + $0x2c] sm:$0xf]
  %v34 = vld [vmem:[%s1 + $0x30] sm:$0xf]
  %v35 = vld [vmem:[%s1 + $0x34] sm:$0xf]
  %v36 = vld [vmem:[%s1 + $0x38] sm:$0xf]
  %v37 = vld [vmem:[%s1 + $0x3c] sm:$0xf]
  %v40 = vunpack.c.l.b16 %v20
  %v41 = vunpack.c.l.b16 %v21
  %v42 = vpack.c.b16 %v41, %v40
  %v60 = vunpack.c.l.b16 %v22
  %v61 = vunpack.c.l.b16 %v23
  %v62 = vunpack.c.l.b16 %v24
  %v63 = vunpack.c.l.b16 %v25
  %v64 = vunpack.c.l.b16 %v26
  %v65 = vunpack.c.l.b16 %v27
  %v66 = vunpack.c.l.b16 %v28
  %v67 = vunpack.c.l.b16 %v29
  %v68 = vunpack.c.l.b16 %v30
  %v69 = vunpack.c.l.b16 %v31
  %v70 = vunpack.c.l.b16 %v32
  %v71 = vunpack.c.l.b16 %v33
  %v72 = vunpack.c.l.b16 %v34
  %v73 = vunpack.c.l.b16 %v35
  %v74 = vunpack.c.l.b16 %v36
  %v75 = vunpack.c.l.b16 %v37
  %v76 = vpack.c.b16 %v61, %v60
  %v77 = vpack.c.b16 %v63, %v62
  %v78 = vpack.c.b16 %v65, %v64
  %v79 = vpack.c.b16 %v67, %v66
  %v80 = vpack.c.b16 %v69, %v68
  %v81 = vpack.c.b16 %v71, %v70
  %v82 = vpack.c.b16 %v73, %v72
  %v83 = vpack.c.b16 %v75, %v74
  %92 = vmatprep.subr.bf16.mxu0 0
  %93 = vmatpush1.bf16.msra.mxu0 %v83
  %94 = vmatprep.subr.bf16.mxu0 0
  %95 = vmatpush1.bf16.msra.mxu0 %v82
  %96 = vmatprep.subr.bf16.mxu0 0
  %97 = vmatpush1.bf16.msra.mxu0 %v81
  %98 = vmatprep.subr.bf16.mxu0 0
  %99 = vmatpush1.bf16.msra.mxu0 %v80
  %100 = vmatprep.subr.bf16.mxu0 0
  %101 = vmatpush1.bf16.msra.mxu0 %v79
  %102 = vmatprep.subr.bf16.mxu0 0
  %103 = vmatpush1.bf16.msra.mxu0 %v78
  %104 = vmatprep.subr.bf16.mxu0 0
  %105 = vmatpush1.bf16.msra.mxu0 %v77
  %106 = vmatprep.subr.bf16.mxu0 0
  %107 = vmatpush1.bf16.msra.mxu0 %v76
  %108 = vmatprep.subr.bf16.mxu0 0
  %109 = vmatpush2.bf16.msra.mxu0 0
  %110 = vmatprep.subr.bf16.mxu0 0
  %111 = vmatpush2.bf16.msra.mxu0 0
  %112 = vmatprep.subr.bf16.mxu0 0
  %113 = vmatpush2.bf16.msra.mxu0 0
  %114 = vmatprep.subr.bf16.mxu0 0
  %115 = vmatpush2.bf16.msra.mxu0 0
  %116 = vmatprep.subr.bf16.mxu0 0
  %117 = vmatpush2.bf16.msra.mxu0 0
  %118 = vmatprep.subr.bf16.mxu0 0
  %119 = vmatpush2.bf16.msra.mxu0 0
  %120 = vmatprep.subr.bf16.mxu0 0
  %121 = vmatpush2.bf16.msra.mxu0 0
  %122 = vmatprep.subr.bf16.mxu0 0
  %123 = vmatpush2.bf16.msra.mxu0 0
  %124 = vmatprep.mubr.bf16.mxu0 0
  %125 = vmatmul.mubr.bf16.gmra.mxu0 %v42
  %v126 = vpop.f32.mrf.mxu0
  %v127 = vadd.f32 0.0, %v126
  %v128 = vpop.f32.mrf.mxu0
  %v129 = vpop.f32.mrf.mxu0
  %v130 = vadd.f32 0.0, %v129
  %v131 = vpop.f32.mrf.mxu0
  %132 = vdwg.mxu0
  %v133 = vadd.f32 %v18, %v127
  %v134 = vadd.f32 %v19, %v130
  %135 = vst [vmem:[#allocation2] sm:$0xff] %v133
  %136 = vst [vmem:[#allocation2 + $0x8] sm:$0xff] %v134
  // Predicated region
  $region14: #{fft_circulant_forward.1} parent=0 // pred_check
    %p137 = pneg %p12
  $region15: #{fft_circulant_forward.1} parent=0 // pred_check_branch
    %139 = sbr.rel (%p137) target = $region17
  $region16: #{fft_circulant_forward.1} parent=0 // pred_region
    %v140 = vld [vmem:[#allocation2] sm:$0xff]
    %v141 = vld [vmem:[#allocation2 + $0x8] sm:$0xff]
    %142 = vst [vmem:[%s2] sm:$0xff] %v140
    %143 = vst [vmem:[%s2 + $0x8] sm:$0xff] %v141
  $region17: #{fft_circulant_forward.1} parent=0 // pred_fallthru
    _
  // Predicated region
  $region18: #{fft_circulant_forward.1} parent=0 // pred_check
    _
  $region19: #{fft_circulant_forward.1} parent=0 // pred_check_branch
    %145 = sbr.rel (0) target = $region21
  $region20: #{fft_circulant_forward.1} parent=0 // pred_region
    _
  $region21: #{fft_circulant_forward.1} parent=0 // pred_fallthru
    _
  // Predicated region
  $region22: #{fft_circulant_forward.1} parent=0 // pred_check
    _
  $region23: #{fft_circulant_forward.1} parent=0 // pred_check_branch
    %147 = sbr.rel (0) target = $region25
  $region24: #{fft_circulant_forward.1} parent=0 // pred_region
    _
  $region25: #{fft_circulant_forward.1} parent=0 // pred_fallthru
    _

</llo_original>
